<compile_context>
chip_gen: v7x
topology: tpu7x:2x2x1
jax: 0.10.0
libtpu: 0.0.40
codegen_flags: <defaults>
</compile_context>

<pallas_src>
import jax
import jax.numpy as jnp
from jax import lax
from jax.experimental import pallas as pl
from jax.experimental.pallas import tpu as pltpu


OUT_PAD = 128  # lane-dense padded width for fc3's 2 logits


def rnn_fused_kernel(x_ref, s0_ref, w1_ref, b12_ref, w2_ref, w3_ref, b3_ref,
                     out_ref, carry_ref, buf_ref):
    """One grid step == TU timesteps.  carry_ref (constant block index) is the
    resident VMEM carry for the hidden state; buf_ref holds u[t] then state[t]."""
    b = carry_ref.shape[0]            # batch
    tu = buf_ref.shape[0] // b        # timesteps handled this chunk

    @pl.when(pl.program_id(0) == 0)
    def _():
        carry_ref[...] = s0_ref[...]  # load initial hidden state

    # Hoisted fc1 (+ merged b1+b2): all TU timesteps of this chunk in ONE
    # [TU*B, in_f] x [in_f, ndims] matmul (bf16 operands, f32 accumulate).
    buf_ref[...] = (jnp.dot(x_ref[...], w1_ref[...],
                            preferred_element_type=jnp.float32) + b12_ref[...])

    # Sequential recurrence: per step only a [B, ndims] x [ndims, ndims] dot.
    # W2 kept in f32 so rounding error does not compound through the feedback.
    def step(t, h):
        r = pl.multiple_of(t * b, b)
        u_t = buf_ref[pl.ds(r, b), :]
        h = jnp.maximum(u_t + jnp.dot(h, w2_ref[...],
                                      preferred_element_type=jnp.float32), 0.0)
        buf_ref[pl.ds(r, b), :] = h   # overwrite u[t] with state[t]
        return h

    carry_ref[...] = lax.fori_loop(0, tu, step, carry_ref[...], unroll=True)

    # Hoisted fc3: all TU states at once, lane-dense (padded to 128) output.
    out_ref[...] = (jnp.dot(buf_ref[...], w3_ref[...],
                            preferred_element_type=jnp.float32) + b3_ref[...])


def _pick_tu(T, cap=128):
    """Largest divisor of T not exceeding `cap` (chunk of timesteps per grid step)."""
    tu = min(T, cap)
    while T % tu:
        tu -= 1
    return tu


def rnn_sequence_forward(xs, state0, prepared):
    """Fused multi-step forward.

    xs: [T, B, input_size] f32, state0: [B, ndims] f32.
    Returns (outputs [T, B, n_out] f32, final_state [B, ndims] f32).
    """
    w1, b12, w2, w3p, b3p, n_out = prepared
    T, B, in_f = xs.shape
    ndims = state0.shape[1]

    tu = _pick_tu(T)
    n_chunks = T // tu

    # bf16 cast + time/batch flatten done once in the wrapper (not per step).
    xs_flat = xs.astype(jnp.bfloat16).reshape(T * B, in_f)

    const = lambda shape: pl.BlockSpec(shape, lambda g, n=len(shape): (0,) * n)

    # Advisory cost estimate (fc3 term counts the actual padded MXU work).
    flops = 2 * T * B * (in_f * ndims + ndims * ndims + ndims * OUT_PAD)
    bytes_accessed = (T * B * in_f * 2                      # bf16 x stream
                      + in_f * ndims * 2                    # bf16 W1 (once)
                      + ndims * ndims * 4                   # f32 W2 (once)
                      + ndims * OUT_PAD * 4                 # f32 W3 padded (once)
                      + (ndims + OUT_PAD) * 4               # biases
                      + T * B * OUT_PAD * 4                 # padded outputs
                      + 2 * B * ndims * 4)                  # state in/out

    out_pad, state_f = pl.pallas_call(
        rnn_fused_kernel,
        out_shape=(
            jax.ShapeDtypeStruct((T * B, OUT_PAD), jnp.float32),
            jax.ShapeDtypeStruct((B, ndims), jnp.float32),
        ),
        grid=(n_chunks,),
        in_specs=[
            pl.BlockSpec((tu * B, in_f), lambda g: (g, 0)),     # x chunk (streamed, bf16)
            const((B, ndims)),                                  # state0      (resident)
            const((in_f, ndims)),                               # W1 bf16     (resident)
            const((1, ndims)),                                  # b1+b2 f32   (resident)
            const((ndims, ndims)),                              # W2 f32      (resident)
            const((ndims, OUT_PAD)),                            # W3 padded   (resident)
            const((1, OUT_PAD)),                                # b3 padded   (resident)
        ],
        out_specs=(
            pl.BlockSpec((tu * B, OUT_PAD), lambda g: (g, 0)),  # out chunk
            const((B, ndims)),                                  # carried hidden state
        ),
        scratch_shapes=[pltpu.VMEM((tu * B, ndims), jnp.float32)],
        compiler_params=pltpu.CompilerParams(
            dimension_semantics=("arbitrary",)),                # recurrence is sequential
        cost_estimate=pl.CostEstimate(flops=flops, transcendentals=0,
                                      bytes_accessed=bytes_accessed),
    )(xs_flat, state0, w1, b12, w2, w3p, b3p)

    outs = out_pad.reshape(T, B, OUT_PAD)[:, :, :n_out]
    return outs, state_f


def rnn_single_forward(x, state, prepared):
    """Single-step forward matching the PyTorch module: (output [B,2], state [B,ndims])."""
    outs, new_state = rnn_sequence_forward(x[None], state, prepared)
    return outs[0], new_state


def init_params(key, input_size, ndims, n_classes=2):
    """PyTorch-nn.Linear-style init (uniform +/- 1/sqrt(fan_in)); weights [in, out], f32."""
    ks = jax.random.split(key, 6)

    def linear(kw, kb, fan_in, fan_out):
        bound = 1.0 / jnp.sqrt(fan_in)
        w = jax.random.uniform(kw, (fan_in, fan_out), jnp.float32, -bound, bound)
        b = jax.random.uniform(kb, (1, fan_out), jnp.float32, -bound, bound)
        return w, b

    w1, b1 = linear(ks[0], ks[1], input_size, ndims)
    w2, b2 = linear(ks[2], ks[3], ndims, ndims)
    w3, b3 = linear(ks[4], ks[5], ndims, n_classes)
    return (w1, b1, w2, b2, w3, b3)


def prepare_params(params):
    """One-time prep: bf16 W1, merged b1+b2, f32 recurrent W2, fc3 padded to 128 lanes."""
    w1, b1, w2, b2, w3, b3 = params
    ndims = w2.shape[0]
    n_out = w3.shape[1]
    w1_bf = w1.astype(jnp.bfloat16)                                   # [in_f, ndims]
    b12 = (b1 + b2).astype(jnp.float32)                               # [1, ndims]
    w3p = jnp.zeros((ndims, OUT_PAD), jnp.float32).at[:, :n_out].set(w3)
    b3p = jnp.zeros((1, OUT_PAD), jnp.float32).at[:, :n_out].set(b3)
    return (w1_bf, b12, w2.astype(jnp.float32), w3p, b3p, n_out)


def reference_sequence(xs, state0, params):
    """Pure-JAX f32 reference: per-step semantics of the PyTorch module, scanned over T."""
    w1, b1, w2, b2, w3, b3 = params

    def step(state, x):
        h = jnp.maximum(x @ w1 + b1 + state @ w2 + b2, 0.0)
        return h, h @ w3 + b3

    state_f, outs = lax.scan(step, state0, xs)
    return outs, state_f


if __name__ == "__main__":
    # Small shapes consistent with the module (resnet18/34 default: input_size=512).
    B = 8
    INPUT_SIZE = 512
    NDIMS = 128
    T = 6

    key = jax.random.PRNGKey(0)
    k_params, k_x = jax.random.split(key)
    params = init_params(k_params, INPUT_SIZE, NDIMS)
    prepared = prepare_params(params)

    xs = jax.random.normal(k_x, (T, B, INPUT_SIZE), jnp.float32)
    state0 = jnp.zeros((B, NDIMS), jnp.float32)            # init_hidden(batch_size)

    # --- single step (module forward semantics) ---
    out1, st1 = rnn_single_forward(xs[0], state0, prepared)
    out1 = jax.block_until_ready(out1)
    st1 = jax.block_until_ready(st1)
    ref_outs1, ref_st1 = reference_sequence(xs[:1], state0, params)
    assert out1.shape == (B, 2) and st1.shape == (B, NDIMS)
    # Only x/W1 are bf16 (one-shot rounding, no compounding) => tight tolerance.
    assert jnp.allclose(out1, ref_outs1[0], atol=3e-2, rtol=3e-2)
    assert jnp.allclose(st1, ref_st1, atol=3e-2, rtol=3e-2)

    # --- fused multi-step sequence (one pallas_call, weights resident) ---
    outs, st_f = rnn_sequence_forward(xs, state0, prepared)
    outs = jax.block_until_ready(outs)
    st_f = jax.block_until_ready(st_f)
    ref_outs, ref_st = reference_sequence(xs, state0, params)
    assert outs.shape == (T, B, 2) and st_f.shape == (B, NDIMS)
    assert jnp.allclose(outs, ref_outs, atol=3e-2, rtol=3e-2)
    assert jnp.allclose(st_f, ref_st, atol=3e-2, rtol=3e-2)

    print("KERNEL_OK")
</pallas_src>

<mosaic_0001>
module attributes {stable_mosaic.version = 11 : i64} {
  func.func @rnn_fused_kernel(%arg0: i32, %arg1: memref<8x512xbf16, #tpu.memory_space<vmem>>, %arg2: memref<8x128xf32, #tpu.memory_space<vmem>>, %arg3: memref<512x128xbf16, #tpu.memory_space<vmem>>, %arg4: memref<1x128xf32, #tpu.memory_space<vmem>>, %arg5: memref<128x128xf32, #tpu.memory_space<vmem>>, %arg6: memref<128x128xf32, #tpu.memory_space<vmem>>, %arg7: memref<1x128xf32, #tpu.memory_space<vmem>>, %arg8: memref<8x128xf32, #tpu.memory_space<vmem>>, %arg9: memref<8x128xf32, #tpu.memory_space<vmem>>, %arg10: memref<8x128xf32, #tpu.memory_space<vmem>>) attributes {dimension_semantics = [#tpu.dimension_semantics<arbitrary>], iteration_bounds = array<i64: 1>, scalar_prefetch = 0 : i64, scratch_operands = 1 : i64, tpu.core_type = #tpu.core_type<tc>, window_params = [{transform_indices = @transform_0, window_bounds = array<i64: 8, 512>}, {pipeline_mode = #tpu.pipeline_mode<synchronous>, transform_indices = @transform_1, window_bounds = array<i64: 8, 128>}, {pipeline_mode = #tpu.pipeline_mode<synchronous>, transform_indices = @transform_2, window_bounds = array<i64: 512, 128>}, {pipeline_mode = #tpu.pipeline_mode<synchronous>, transform_indices = @transform_3, window_bounds = array<i64: 1, 128>}, {pipeline_mode = #tpu.pipeline_mode<synchronous>, transform_indices = @transform_4, window_bounds = array<i64: 128, 128>}, {pipeline_mode = #tpu.pipeline_mode<synchronous>, transform_indices = @transform_5, window_bounds = array<i64: 128, 128>}, {pipeline_mode = #tpu.pipeline_mode<synchronous>, transform_indices = @transform_6, window_bounds = array<i64: 1, 128>}, {transform_indices = @transform_7, window_bounds = array<i64: 8, 128>}, {pipeline_mode = #tpu.pipeline_mode<synchronous>, transform_indices = @transform_8, window_bounds = array<i64: 8, 128>}]} {
    %c0_i32 = arith.constant 0 : i32
    %0 = arith.cmpi eq, %arg0, %c0_i32 : i32
    %1 = arith.extui %0 : i1 to i32
    %c0_i32_0 = arith.constant 0 : i32
    %2 = arith.cmpi ne, %1, %c0_i32_0 : i32
    scf.if %2 {
      %c0_28 = arith.constant 0 : index
      %c0_29 = arith.constant 0 : index
      %30 = vector.load %arg2[%c0_28, %c0_29] : memref<8x128xf32, #tpu.memory_space<vmem>>, vector<8x128xf32>
      %c0_30 = arith.constant 0 : index
      %c0_31 = arith.constant 0 : index
      %31 = vector.load %arg9[%c0_30, %c0_31] : memref<8x128xf32, #tpu.memory_space<vmem>>, vector<8x128xf32>
      tpu.vector_store %arg9[%c0_30, %c0_31], %30 {strides = array<i32>} : memref<8x128xf32, #tpu.memory_space<vmem>>, vector<8x128xf32>,
    } else {
    }
    %c0 = arith.constant 0 : index
    %c0_1 = arith.constant 0 : index
    %3 = vector.load %arg1[%c0, %c0_1] : memref<8x512xbf16, #tpu.memory_space<vmem>>, vector<8x512xbf16>
    %c0_2 = arith.constant 0 : index
    %c0_3 = arith.constant 0 : index
    %4 = vector.load %arg3[%c0_2, %c0_3] : memref<512x128xbf16, #tpu.memory_space<vmem>>, vector<512x128xbf16>
    %cst = arith.constant dense<0.000000e+00> : vector<8x128xf32>
    %5 = tpu.matmul %3, %4, %cst {dimension_numbers = #tpu.dot_dimension_numbers<[1], [0], [0], [1], [0, 0, 1, 1], [], []>} : vector<8x512xbf16>, vector<512x128xbf16>, vector<8x128xf32> -> vector<8x128xf32>
    %c0_4 = arith.constant 0 : index
    %c0_5 = arith.constant 0 : index
    %6 = vector.load %arg4[%c0_4, %c0_5] : memref<1x128xf32, #tpu.memory_space<vmem>>, vector<1x128xf32>
    %7 = vector.broadcast %6 : vector<1x128xf32> to vector<8x128xf32>
    %8 = arith.addf %5, %7 : vector<8x128xf32>
    %c0_6 = arith.constant 0 : index
    %c0_7 = arith.constant 0 : index
    %9 = vector.load %arg10[%c0_6, %c0_7] : memref<8x128xf32, #tpu.memory_space<vmem>>, vector<8x128xf32>
    tpu.vector_store %arg10[%c0_6, %c0_7], %8 {strides = array<i32>} : memref<8x128xf32, #tpu.memory_space<vmem>>, vector<8x128xf32>,
    %c0_8 = arith.constant 0 : index
    %c0_9 = arith.constant 0 : index
    %10 = vector.load %arg9[%c0_8, %c0_9] : memref<8x128xf32, #tpu.memory_space<vmem>>, vector<8x128xf32>
    %c0_i32_10 = arith.constant 0 : i32
    %c8_i32 = arith.constant 8 : i32
    %11 = arith.muli %c0_i32_10, %c8_i32 : i32
    %12 = tpu.assume_multiple %11, 8 : i32
    %13 = arith.index_cast %12 : i32 to index
    %c0_11 = arith.constant 0 : index
    %14 = vector.load %arg10[%13, %c0_11] : memref<8x128xf32, #tpu.memory_space<vmem>>, vector<8x128xf32>
    %c0_12 = arith.constant 0 : index
    %c0_13 = arith.constant 0 : index
    %15 = vector.load %arg5[%c0_12, %c0_13] : memref<128x128xf32, #tpu.memory_space<vmem>>, vector<128x128xf32>
    %cst_14 = arith.constant dense<0.000000e+00> : vector<8x128xf32>
    %16 = tpu.matmul %10, %15, %cst_14 {dimension_numbers = #tpu.dot_dimension_numbers<[1], [0], [0], [1], [0, 0, 1, 1], [], []>} : vector<8x128xf32>, vector<128x128xf32>, vector<8x128xf32> -> vector<8x128xf32>
    %17 = arith.addf %14, %16 : vector<8x128xf32>
    %cst_15 = arith.constant 0.000000e+00 : f32
    %18 = vector.broadcast %cst_15 : f32 to vector<8x128xf32>
    %19 = arith.maximumf %17, %18 : vector<8x128xf32>
    %20 = arith.index_cast %12 : i32 to index
    %c0_16 = arith.constant 0 : index
    %21 = vector.load %arg10[%20, %c0_16] : memref<8x128xf32, #tpu.memory_space<vmem>>, vector<8x128xf32>
    tpu.vector_store %arg10[%20, %c0_16], %19 {strides = array<i32>} : memref<8x128xf32, #tpu.memory_space<vmem>>, vector<8x128xf32>,
    %c1_i32 = arith.constant 1 : i32
    %c0_17 = arith.constant 0 : index
    %c0_18 = arith.constant 0 : index
    %22 = vector.load %arg9[%c0_17, %c0_18] : memref<8x128xf32, #tpu.memory_space<vmem>>, vector<8x128xf32>
    tpu.vector_store %arg9[%c0_17, %c0_18], %19 {strides = array<i32>} : memref<8x128xf32, #tpu.memory_space<vmem>>, vector<8x128xf32>,
    %c0_19 = arith.constant 0 : index
    %c0_20 = arith.constant 0 : index
    %23 = vector.load %arg10[%c0_19, %c0_20] : memref<8x128xf32, #tpu.memory_space<vmem>>, vector<8x128xf32>
    %c0_21 = arith.constant 0 : index
    %c0_22 = arith.constant 0 : index
    %24 = vector.load %arg6[%c0_21, %c0_22] : memref<128x128xf32, #tpu.memory_space<vmem>>, vector<128x128xf32>
    %cst_23 = arith.constant dense<0.000000e+00> : vector<8x128xf32>
    %25 = tpu.matmul %23, %24, %cst_23 {dimension_numbers = #tpu.dot_dimension_numbers<[1], [0], [0], [1], [0, 0, 1, 1], [], []>} : vector<8x128xf32>, vector<128x128xf32>, vector<8x128xf32> -> vector<8x128xf32>
    %c0_24 = arith.constant 0 : index
    %c0_25 = arith.constant 0 : index
    %26 = vector.load %arg7[%c0_24, %c0_25] : memref<1x128xf32, #tpu.memory_space<vmem>>, vector<1x128xf32>
    %27 = vector.broadcast %26 : vector<1x128xf32> to vector<8x128xf32>
    %28 = arith.addf %25, %27 : vector<8x128xf32>
    %c0_26 = arith.constant 0 : index
    %c0_27 = arith.constant 0 : index
    %29 = vector.load %arg8[%c0_26, %c0_27] : memref<8x128xf32, #tpu.memory_space<vmem>>, vector<8x128xf32>
    tpu.vector_store %arg8[%c0_26, %c0_27], %28 {strides = array<i32>} : memref<8x128xf32, #tpu.memory_space<vmem>>, vector<8x128xf32>,
    return
  }
  func.func @transform_0(%arg0: i32) -> (i32, i32) {
    %c0_i32 = arith.constant 0 : i32
    %c0_i32_0 = arith.constant 0 : i32
    return %arg0, %c0_i32 : i32, i32
  }
  func.func @transform_1(%arg0: i32) -> (i32, i32) {
    %c0_i32 = arith.constant 0 : i32
    %c0_i32_0 = arith.constant 0 : i32
    %c0_i32_1 = arith.constant 0 : i32
    return %c0_i32, %c0_i32_0 : i32, i32
  }
  func.func @transform_2(%arg0: i32) -> (i32, i32) {
    %c0_i32 = arith.constant 0 : i32
    %c0_i32_0 = arith.constant 0 : i32
    %c0_i32_1 = arith.constant 0 : i32
    return %c0_i32, %c0_i32_0 : i32, i32
  }
  func.func @transform_3(%arg0: i32) -> (i32, i32) {
    %c0_i32 = arith.constant 0 : i32
    %c0_i32_0 = arith.constant 0 : i32
    %c0_i32_1 = arith.constant 0 : i32
    return %c0_i32, %c0_i32_0 : i32, i32
  }
  func.func @transform_4(%arg0: i32) -> (i32, i32) {
    %c0_i32 = arith.constant 0 : i32
    %c0_i32_0 = arith.constant 0 : i32
    %c0_i32_1 = arith.constant 0 : i32
    return %c0_i32, %c0_i32_0 : i32, i32
  }
  func.func @transform_5(%arg0: i32) -> (i32, i32) {
    %c0_i32 = arith.constant 0 : i32
    %c0_i32_0 = arith.constant 0 : i32
    %c0_i32_1 = arith.constant 0 : i32
    return %c0_i32, %c0_i32_0 : i32, i32
  }
  func.func @transform_6(%arg0: i32) -> (i32, i32) {
    %c0_i32 = arith.constant 0 : i32
    %c0_i32_0 = arith.constant 0 : i32
    %c0_i32_1 = arith.constant 0 : i32
    return %c0_i32, %c0_i32_0 : i32, i32
  }
  func.func @transform_7(%arg0: i32) -> (i32, i32) {
    %c0_i32 = arith.constant 0 : i32
    %c0_i32_0 = arith.constant 0 : i32
    return %arg0, %c0_i32 : i32, i32
  }
  func.func @transform_8(%arg0: i32) -> (i32, i32) {
    %c0_i32 = arith.constant 0 : i32
    %c0_i32_0 = arith.constant 0 : i32
    %c0_i32_1 = arith.constant 0 : i32
    return %c0_i32, %c0_i32_0 : i32, i32
  }
}

</mosaic_0001>

<llo_original>
// kernel: tpu_custom_call.1
$region0: #{tpu_custom_call.1}
  #allocation0 [shape = 'u32[]', space=smem, size = 0x4, offset = 0x4, fixed_abs, tag = 'smem constant byte address 0x4 - core index']
  #allocation1 [shape = 'u32[144,128]{1,0:T(1,128)}', space=vmem, size = 0x12000, scoped, tag = 'internal scratch']
  #allocation2 [shape = 'f32[8,128]{1,0:T(8,128)}', space=vmem, size = 0x1000, scoped, tag = 'scratch operand']
  %s0 = inlined_call_operand.hbm [shape: bf16[8,512], index: 0, kind: input, shape index: {}]
  %s1 = inlined_call_operand.hbm [shape: f32[8,128], index: 1, kind: input, shape index: {}]
  %s2 = inlined_call_operand.hbm [shape: bf16[512,128], index: 2, kind: input, shape index: {}]
  %s3 = inlined_call_operand.vmem [shape: f32[1,128], index: 3, kind: input, shape index: {}]
  %s4 = inlined_call_operand.hbm [shape: f32[128,128], index: 4, kind: input, shape index: {}]
  %s5 = inlined_call_operand.hbm [shape: f32[128,128], index: 5, kind: input, shape index: {}]
  %s6 = inlined_call_operand.vmem [shape: f32[1,128], index: 6, kind: input, shape index: {}]
  %s7 = inlined_call_operand.hbm [shape: f32[8,128], index: 7, kind: output, shape index: {0}]
  %s8 = inlined_call_operand.hbm [shape: f32[8,128], index: 8, kind: output, shape index: {1}]
  %9 = xla_tuple %s7, %s8
  %s10 = sld [smem:[#allocation0]]
  $region70: #{tpu_custom_call.1} parent=0
    _
  %s12 = ssub.s32 1, %s10
  %s13 = scalar_select 0, %s12, %s10
  $region1: #{tpu_custom_call.1} parent=0
    #allocation3 [shape = 'u8[8192]{0}', space=vmem, size = 0x2000, scoped, tag = 'input window, operand 0, single buffered']
    #allocation4 [shape = 's32[1]{0}', space=sflag, size = 0x4, scoped, tag = 'scoped memory for tpu_custom_call.1']
    #allocation5 [shape = 's32[1]{0}', space=sflag, size = 0x4, scoped, tag = 'scoped memory for tpu_custom_call.1']
    #allocation6 [shape = 'u8[4096]{0}', space=vmem, size = 0x1000, scoped, tag = 'input window, operand 1, single buffered']
    #allocation7 [shape = 's32[1]{0}', space=sflag, size = 0x4, scoped, tag = 'scoped memory for tpu_custom_call.1']
    #allocation8 [shape = 'u8[131072]{0}', space=vmem, size = 0x20000, scoped, tag = 'input window, operand 2, single buffered']
    #allocation9 [shape = 'u8[65536]{0}', space=vmem, size = 0x10000, scoped, tag = 'input window, operand 4, single buffered']
    #allocation10 [shape = 's32[1]{0}', space=sflag, size = 0x4, scoped, tag = 'scoped memory for tpu_custom_call.1']
    #allocation11 [shape = 'u8[65536]{0}', space=vmem, size = 0x10000, scoped, tag = 'input window, operand 5, single buffered']
    #allocation12 [shape = 'u8[4096]{0}', space=vmem, size = 0x1000, scoped, tag = 'output window, operand 0, single buffered']
    #allocation13 [shape = 'u8[4096]{0}', space=vmem, size = 0x1000, scoped, tag = 'output window, operand 1, single buffered']
    #allocation14 [shape = 's32[1]{0}', space=sflag, size = 0x4, scoped, tag = 'scoped memory for tpu_custom_call.1']
    %14 = vsyncpa [#allocation4], 0
    %15 = vsyncpa [#allocation7], 0
    %16 = vsyncpa [#allocation10], 0
    %17 = vsyncpa [#allocation5], 0
    %18 = vsyncpa [#allocation14], 0
    // Predicated region
    $region2: #{tpu_custom_call.1} parent=1 // pred_check
      _
    $region3: #{tpu_custom_call.1} parent=1 // pred_check_branch
      %20 = sbr.rel (0) target = $region5
    $region4: #{tpu_custom_call.1} parent=1 // pred_region
      %s22 = ssub.s32 256, 256
      %23 = vsyncadd [#allocation4], %s22
      %s25 = sshll.u32 [#allocation3], 4
      %s26 = int_to_ptr.vmem [resolvable:$true] %s25
      %28 = dma.hbm_to_vmem [thread:$0]  %s0, 256, %s26, [#allocation4]
    $region5: #{tpu_custom_call.1} parent=1 // pred_fallthru
      _
    // Predicated region
    $region6: #{tpu_custom_call.1} parent=1 // pred_check
      _
    $region7: #{tpu_custom_call.1} parent=1 // pred_check_branch
      %30 = sbr.rel (0) target = $region9
    $region8: #{tpu_custom_call.1} parent=1 // pred_region
      %s32 = ssub.s32 128, 128
      %33 = vsyncadd [#allocation7], %s32
      %s35 = sshll.u32 [#allocation6], 4
      %s36 = int_to_ptr.vmem [resolvable:$true] %s35
      %38 = dma.hbm_to_vmem [thread:$0]  %s1, 128, %s36, [#allocation7]
    $region9: #{tpu_custom_call.1} parent=1 // pred_fallthru
      _
    // Predicated region
    $region10: #{tpu_custom_call.1} parent=1 // pred_check
      _
    $region11: #{tpu_custom_call.1} parent=1 // pred_check_branch
      %40 = sbr.rel (0) target = $region13
    $region12: #{tpu_custom_call.1} parent=1 // pred_region
      %s42 = ssub.s32 4096, 4096
      %43 = vsyncadd [#allocation7], %s42
      %s44 = sshll.u32 [#allocation8], 4
      %s45 = int_to_ptr.vmem [resolvable:$true] %s44
      %50 = dma.hbm_to_vmem [thread:$0]  %s2, 4096, %s45, [#allocation7], 64, 64, 4
    $region13: #{tpu_custom_call.1} parent=1 // pred_fallthru
      _
    // Predicated region
    $region14: #{tpu_custom_call.1} parent=1 // pred_check
      _
    $region15: #{tpu_custom_call.1} parent=1 // pred_check_branch
      %52 = sbr.rel (0) target = $region17
    $region16: #{tpu_custom_call.1} parent=1 // pred_region
      _
    $region17: #{tpu_custom_call.1} parent=1 // pred_fallthru
      _
    // Predicated region
    $region18: #{tpu_custom_call.1} parent=1 // pred_check
      _
    $region19: #{tpu_custom_call.1} parent=1 // pred_check_branch
      %54 = sbr.rel (0) target = $region21
    $region20: #{tpu_custom_call.1} parent=1 // pred_region
      %s56 = ssub.s32 2048, 2048
      %57 = vsyncadd [#allocation10], %s56
      %s58 = sshll.u32 [#allocation9], 4
      %s59 = int_to_ptr.vmem [resolvable:$true] %s58
      %64 = dma.hbm_to_vmem [thread:$0]  %s4, 2048, %s59, [#allocation10], 128, 128, 8
    $region21: #{tpu_custom_call.1} parent=1 // pred_fallthru
      _
    // Predicated region
    $region22: #{tpu_custom_call.1} parent=1 // pred_check
      _
    $region23: #{tpu_custom_call.1} parent=1 // pred_check_branch
      %66 = sbr.rel (0) target = $region25
    $region24: #{tpu_custom_call.1} parent=1 // pred_region
      %s68 = ssub.s32 2048, 2048
      %69 = vsyncadd [#allocation10], %s68
      %s70 = sshll.u32 [#allocation11], 4
      %s71 = int_to_ptr.vmem [resolvable:$true] %s70
      %76 = dma.hbm_to_vmem [thread:$0]  %s5, 2048, %s71, [#allocation10], 128, 128, 8
    $region25: #{tpu_custom_call.1} parent=1 // pred_fallthru
      _
    // Predicated region
    $region26: #{tpu_custom_call.1} parent=1 // pred_check
      _
    $region27: #{tpu_custom_call.1} parent=1 // pred_check_branch
      %78 = sbr.rel (0) target = $region29
    $region28: #{tpu_custom_call.1} parent=1 // pred_region
      _
    $region29: #{tpu_custom_call.1} parent=1 // pred_fallthru
      _
    // Predicated region
    $region30: #{tpu_custom_call.1} parent=1 // pred_check
      _
    $region31: #{tpu_custom_call.1} parent=1 // pred_check_branch
      %80 = sbr.rel (0) target = $region33
    $region32: #{tpu_custom_call.1} parent=1 // pred_region
      %81 = dma.done [#allocation4], 256
    $region33: #{tpu_custom_call.1} parent=1 // pred_fallthru
      _
    // Predicated region
    $region34: #{tpu_custom_call.1} parent=1 // pred_check
      _
    $region35: #{tpu_custom_call.1} parent=1 // pred_check_branch
      %83 = sbr.rel (0) target = $region37
    $region36: #{tpu_custom_call.1} parent=1 // pred_region
      %84 = dma.done [#allocation7], 128
    $region37: #{tpu_custom_call.1} parent=1 // pred_fallthru
      _
    // Predicated region
    $region38: #{tpu_custom_call.1} parent=1 // pred_check
      _
    $region39: #{tpu_custom_call.1} parent=1 // pred_check_branch
      %86 = sbr.rel (0) target = $region41
    $region40: #{tpu_custom_call.1} parent=1 // pred_region
      %87 = dma.done [#allocation7], 4096
    $region41: #{tpu_custom_call.1} parent=1 // pred_fallthru
      _
    // Predicated region
    $region42: #{tpu_custom_call.1} parent=1 // pred_check
      _
    $region43: #{tpu_custom_call.1} parent=1 // pred_check_branch
      %89 = sbr.rel (0) target = $region45
    $region44: #{tpu_custom_call.1} parent=1 // pred_region
      %90 = dma.done [#allocation10], 2048
    $region45: #{tpu_custom_call.1} parent=1 // pred_fallthru
      _
    // Predicated region
    $region46: #{tpu_custom_call.1} parent=1 // pred_check
      _
    $region47: #{tpu_custom_call.1} parent=1 // pred_check_branch
      %92 = sbr.rel (0) target = $region49
    $region48: #{tpu_custom_call.1} parent=1 // pred_region
      %93 = dma.done [#allocation10], 2048
    $region49: #{tpu_custom_call.1} parent=1 // pred_fallthru
      _
    %p95 = scmp.eq.s32.totalorder 0, 0
    // Predicated region
    $region50: #{tpu_custom_call.1} parent=1 // pred_check
      %p96 = pneg %p95
    $region51: #{tpu_custom_call.1} parent=1 // pred_check_branch
      %98 = sbr.rel (%p96) target = $region53
    $region52: #{tpu_custom_call.1} parent=1 // pred_region
      %v99 = vld [vmem:[#allocation6] sm:$0xff]
      %100 = vst [vmem:[#allocation13] sm:$0xff] %v99
    $region53: #{tpu_custom_call.1} parent=1 // pred_fallthru
      _
    %v101 = vld [vmem:[#allocation3] sm:$0xff]
    %v102 = vld [vmem:[#allocation3 + $0x8] sm:$0xff]
    %v103 = vld [vmem:[#allocation8] sm:$0xf]
    %v104 = vld [vmem:[#allocation8 + $0x4] sm:$0xf]
    %v105 = vld [vmem:[#allocation8 + $0x8] sm:$0xf]
    %v106 = vld [vmem:[#allocation8 + $0xc] sm:$0xf]
    %v107 = vld [vmem:[#allocation8 + $0x10] sm:$0xf]
    %v108 = vld [vmem:[#allocation8 + $0x14] sm:$0xf]
    %v109 = vld [vmem:[#allocation8 + $0x18] sm:$0xf]
    %v110 = vld [vmem:[#allocation8 + $0x1c] sm:$0xf]
    %v111 = vld [vmem:[#allocation8 + $0x20] sm:$0xf]
    %v112 = vld [vmem:[#allocation8 + $0x24] sm:$0xf]
    %v113 = vld [vmem:[#allocation8 + $0x28] sm:$0xf]
    %v114 = vld [vmem:[#allocation8 + $0x2c] sm:$0xf]
    %v115 = vld [vmem:[#allocation8 + $0x30] sm:$0xf]
    %v116 = vld [vmem:[#allocation8 + $0x34] sm:$0xf]
    %v117 = vld [vmem:[#allocation8 + $0x38] sm:$0xf]
    %v118 = vld [vmem:[#allocation8 + $0x3c] sm:$0xf]
    %v119 = vld [vmem:[#allocation8 + $0x40] sm:$0xf]
    %v120 = vld [vmem:[#allocation8 + $0x44] sm:$0xf]
    %v121 = vld [vmem:[#allocation8 + $0x48] sm:$0xf]
    %v122 = vld [vmem:[#allocation8 + $0x4c] sm:$0xf]
    %v123 = vld [vmem:[#allocation8 + $0x50] sm:$0xf]
    %v124 = vld [vmem:[#allocation8 + $0x54] sm:$0xf]
    %v125 = vld [vmem:[#allocation8 + $0x58] sm:$0xf]
    %v126 = vld [vmem:[#allocation8 + $0x5c] sm:$0xf]
    %v127 = vld [vmem:[#allocation8 + $0x60] sm:$0xf]
    %v128 = vld [vmem:[#allocation8 + $0x64] sm:$0xf]
    %v129 = vld [vmem:[#allocation8 + $0x68] sm:$0xf]
    %v130 = vld [vmem:[#allocation8 + $0x6c] sm:$0xf]
    %v131 = vld [vmem:[#allocation8 + $0x70] sm:$0xf]
    %v132 = vld [vmem:[#allocation8 + $0x74] sm:$0xf]
    %v133 = vld [vmem:[#allocation8 + $0x78] sm:$0xf]
    %v134 = vld [vmem:[#allocation8 + $0x7c] sm:$0xf]
    %v135 = vld [vmem:[#allocation8 + $0x80] sm:$0xf]
    %v136 = vld [vmem:[#allocation8 + $0x84] sm:$0xf]
    %v137 = vld [vmem:[#allocation8 + $0x88] sm:$0xf]
    %v138 = vld [vmem:[#allocation8 + $0x8c] sm:$0xf]
    %v139 = vld [vmem:[#allocation8 + $0x90] sm:$0xf]
    %v140 = vld [vmem:[#allocation8 + $0x94] sm:$0xf]
    %v141 = vld [vmem:[#allocation8 + $0x98] sm:$0xf]
    %v142 = vld [vmem:[#allocation8 + $0x9c] sm:$0xf]
    %v143 = vld [vmem:[#allocation8 + $0xa0] sm:$0xf]
    %v144 = vld [vmem:[#allocation8 + $0xa4] sm:$0xf]
    %v145 = vld [vmem:[#allocation8 + $0xa8] sm:$0xf]
    %v146 = vld [vmem:[#allocation8 + $0xac] sm:$0xf]
    %v147 = vld [vmem:[#allocation8 + $0xb0] sm:$0xf]
    %v148 = vld [vmem:[#allocation8 + $0xb4] sm:$0xf]
    %v149 = vld [vmem:[#allocation8 + $0xb8] sm:$0xf]
    %v150 = vld [vmem:[#allocation8 + $0xbc] sm:$0xf]
    %v151 = vld [vmem:[#allocation8 + $0xc0] sm:$0xf]
    %v152 = vld [vmem:[#allocation8 + $0xc4] sm:$0xf]
    %v153 = vld [vmem:[#allocation8 + $0xc8] sm:$0xf]
    %v154 = vld [vmem:[#allocation8 + $0xcc] sm:$0xf]
    %v155 = vld [vmem:[#allocation8 + $0xd0] sm:$0xf]
    %v156 = vld [vmem:[#allocation8 + $0xd4] sm:$0xf]
    %v157 = vld [vmem:[#allocation8 + $0xd8] sm:$0xf]
    %v158 = vld [vmem:[#allocation8 + $0xdc] sm:$0xf]
    %v159 = vld [vmem:[#allocation8 + $0xe0] sm:$0xf]
    %v160 = vld [vmem:[#allocation8 + $0xe4] sm:$0xf]
    %v161 = vld [vmem:[#allocation8 + $0xe8] sm:$0xf]
    %v162 = vld [vmem:[#allocation8 + $0xec] sm:$0xf]
    %v163 = vld [vmem:[#allocation8 + $0xf0] sm:$0xf]
    %v164 = vld [vmem:[#allocation8 + $0xf4] sm:$0xf]
    %v165 = vld [vmem:[#allocation8 + $0xf8] sm:$0xf]
    %v166 = vld [vmem:[#allocation8 + $0xfc] sm:$0xf]
    %v167 = vld [vmem:[%s3] sm:$0x1]
    %v169 = vlaneseq
    %v170 = vshrl.u32 %v169, 7
    %v171 = vsub.s32 0, %v170
    %v172 = vrot.slane %v167, %v171
    %v176 = vunpack.c.l.b16 %v101
    %v177 = vunpack.c.h.b16 %v101
    %v178 = vunpack.c.l.b16 %v102
    %v179 = vunpack.c.h.b16 %v102
    %v180 = vpack.c.b16 %v176, %v176
    %v181 = vpack.c.b16 %v177, %v177
    %v182 = vpack.c.b16 %v178, %v178
    %v183 = vpack.c.b16 %v179, %v179
    %v252 = vunpack.c.l.b16 %v103
    %v253 = vunpack.c.l.b16 %v104
    %v254 = vunpack.c.l.b16 %v105
    %v255 = vunpack.c.l.b16 %v106
    %v256 = vunpack.c.l.b16 %v107
    %v257 = vunpack.c.l.b16 %v108
    %v258 = vunpack.c.l.b16 %v109
    %v259 = vunpack.c.l.b16 %v110
    %v260 = vunpack.c.l.b16 %v111
    %v261 = vunpack.c.l.b16 %v112
    %v262 = vunpack.c.l.b16 %v113
    %v263 = vunpack.c.l.b16 %v114
    %v264 = vunpack.c.l.b16 %v115
    %v265 = vunpack.c.l.b16 %v116
    %v266 = vunpack.c.l.b16 %v117
    %v267 = vunpack.c.l.b16 %v118
    %v268 = vunpack.c.l.b16 %v119
    %v269 = vunpack.c.l.b16 %v120
    %v270 = vunpack.c.l.b16 %v121
    %v271 = vunpack.c.l.b16 %v122
    %v272 = vunpack.c.l.b16 %v123
    %v273 = vunpack.c.l.b16 %v124
    %v274 = vunpack.c.l.b16 %v125
    %v275 = vunpack.c.l.b16 %v126
    %v276 = vunpack.c.l.b16 %v127
    %v277 = vunpack.c.l.b16 %v128
    %v278 = vunpack.c.l.b16 %v129
    %v279 = vunpack.c.l.b16 %v130
    %v280 = vunpack.c.l.b16 %v131
    %v281 = vunpack.c.l.b16 %v132
    %v282 = vunpack.c.l.b16 %v133
    %v283 = vunpack.c.l.b16 %v134
    %v284 = vunpack.c.l.b16 %v135
    %v285 = vunpack.c.l.b16 %v136
    %v286 = vunpack.c.l.b16 %v137
    %v287 = vunpack.c.l.b16 %v138
    %v288 = vunpack.c.l.b16 %v139
    %v289 = vunpack.c.l.b16 %v140
    %v290 = vunpack.c.l.b16 %v141
    %v291 = vunpack.c.l.b16 %v142
    %v292 = vunpack.c.l.b16 %v143
    %v293 = vunpack.c.l.b16 %v144
    %v294 = vunpack.c.l.b16 %v145
    %v295 = vunpack.c.l.b16 %v146
    %v296 = vunpack.c.l.b16 %v147
    %v297 = vunpack.c.l.b16 %v148
    %v298 = vunpack.c.l.b16 %v149
    %v299 = vunpack.c.l.b16 %v150
    %v300 = vunpack.c.l.b16 %v151
    %v301 = vunpack.c.l.b16 %v152
    %v302 = vunpack.c.l.b16 %v153
    %v303 = vunpack.c.l.b16 %v154
    %v304 = vunpack.c.l.b16 %v155
    %v305 = vunpack.c.l.b16 %v156
    %v306 = vunpack.c.l.b16 %v157
    %v307 = vunpack.c.l.b16 %v158
    %v308 = vunpack.c.l.b16 %v159
    %v309 = vunpack.c.l.b16 %v160
    %v310 = vunpack.c.l.b16 %v161
    %v311 = vunpack.c.l.b16 %v162
    %v312 = vunpack.c.l.b16 %v163
    %v313 = vunpack.c.l.b16 %v164
    %v314 = vunpack.c.l.b16 %v165
    %v315 = vunpack.c.l.b16 %v166
    %v316 = vpack.c.b16 %v253, %v252
    %v317 = vpack.c.b16 %v255, %v254
    %v318 = vpack.c.b16 %v257, %v256
    %v319 = vpack.c.b16 %v259, %v258
    %v320 = vpack.c.b16 %v261, %v260
    %v321 = vpack.c.b16 %v263, %v262
    %v322 = vpack.c.b16 %v265, %v264
    %v323 = vpack.c.b16 %v267, %v266
    %v324 = vpack.c.b16 %v269, %v268
    %v325 = vpack.c.b16 %v271, %v270
    %v326 = vpack.c.b16 %v273, %v272
    %v327 = vpack.c.b16 %v275, %v274
    %v328 = vpack.c.b16 %v277, %v276
    %v329 = vpack.c.b16 %v279, %v278
    %v330 = vpack.c.b16 %v281, %v280
    %v331 = vpack.c.b16 %v283, %v282
    %v332 = vpack.c.b16 %v285, %v284
    %v333 = vpack.c.b16 %v287, %v286
    %v334 = vpack.c.b16 %v289, %v288
    %v335 = vpack.c.b16 %v291, %v290
    %v336 = vpack.c.b16 %v293, %v292
    %v337 = vpack.c.b16 %v295, %v294
    %v338 = vpack.c.b16 %v297, %v296
    %v339 = vpack.c.b16 %v299, %v298
    %v340 = vpack.c.b16 %v301, %v300
    %v341 = vpack.c.b16 %v303, %v302
    %v342 = vpack.c.b16 %v305, %v304
    %v343 = vpack.c.b16 %v307, %v306
    %v344 = vpack.c.b16 %v309, %v308
    %v345 = vpack.c.b16 %v311, %v310
    %v346 = vpack.c.b16 %v313, %v312
    %v347 = vpack.c.b16 %v315, %v314
    %380 = vmatprep.subr.bf16.mxu0 0
    %381 = vmatpush1.bf16.msra.mxu0 %v316
    %382 = vmatprep.subr.bf16.mxu0 0
    %383 = vmatpush1.bf16.msra.mxu0 %v317
    %384 = vmatprep.subr.bf16.mxu0 0
    %385 = vmatpush1.bf16.msra.mxu0 %v318
    %386 = vmatprep.subr.bf16.mxu0 0
    %387 = vmatpush1.bf16.msra.mxu0 %v319
    %388 = vmatprep.subr.bf16.mxu0 0
    %389 = vmatpush1.bf16.msra.mxu0 %v320
    %390 = vmatprep.subr.bf16.mxu0 0
    %391 = vmatpush1.bf16.msra.mxu0 %v321
    %392 = vmatprep.subr.bf16.mxu0 0
    %393 = vmatpush1.bf16.msra.mxu0 %v322
    %394 = vmatprep.subr.bf16.mxu0 0
    %395 = vmatpush1.bf16.msra.mxu0 %v323
    %396 = vmatprep.subr.bf16.mxu0 0
    %397 = vmatpush1.bf16.msra.mxu0 %v324
    %398 = vmatprep.subr.bf16.mxu0 0
    %399 = vmatpush1.bf16.msra.mxu0 %v325
    %400 = vmatprep.subr.bf16.mxu0 0
    %401 = vmatpush1.bf16.msra.mxu0 %v326
    %402 = vmatprep.subr.bf16.mxu0 0
    %403 = vmatpush1.bf16.msra.mxu0 %v327
    %404 = vmatprep.subr.bf16.mxu0 0
    %405 = vmatpush1.bf16.msra.mxu0 %v328
    %406 = vmatprep.subr.bf16.mxu0 0
    %407 = vmatpush1.bf16.msra.mxu0 %v329
    %408 = vmatprep.subr.bf16.mxu0 0
    %409 = vmatpush1.bf16.msra.mxu0 %v330
    %410 = vmatprep.subr.bf16.mxu0 0
    %411 = vmatpush1.bf16.msra.mxu0 %v331
    %412 = vmatprep.mubr.bf16.mxu0 %v181
    %413 = vmatmul.mubr.bf16.gmra.mrb[0].mxu0 %v180
    %v414 = vpop.f32.mrb[0].mxu0
    %v415 = vadd.f32 %v172, %v414
    %v416 = vpop.f32.mrb[0].mxu0
    %v417 = vpop.f32.mrb[0].mxu0
    %v418 = vpop.f32.mrb[0].mxu0
    %419 = vdwg.mxu0
    %420 = vmatprep.subr.bf16.mxu0 0
    %421 = vmatpush1.bf16.msra.mxu0 %v332
    %422 = vmatprep.subr.bf16.mxu0 0
    %423 = vmatpush1.bf16.msra.mxu0 %v333
    %424 = vmatprep.subr.bf16.mxu0 0
    %425 = vmatpush1.bf16.msra.mxu0 %v334
    %426 = vmatprep.subr.bf16.mxu0 0
    %427 = vmatpush1.bf16.msra.mxu0 %v335
    %428 = vmatprep.subr.bf16.mxu0 0
    %429 = vmatpush1.bf16.msra.mxu0 %v336
    %430 = vmatprep.subr.bf16.mxu0 0
    %431 = vmatpush1.bf16.msra.mxu0 %v337
    %432 = vmatprep.subr.bf16.mxu0 0
    %433 = vmatpush1.bf16.msra.mxu0 %v338
    %434 = vmatprep.subr.bf16.mxu0 0
    %435 = vmatpush1.bf16.msra.mxu0 %v339
    %436 = vmatprep.subr.bf16.mxu0 0
    %437 = vmatpush1.bf16.msra.mxu0 %v340
    %438 = vmatprep.subr.bf16.mxu0 0
    %439 = vmatpush1.bf16.msra.mxu0 %v341
    %440 = vmatprep.subr.bf16.mxu0 0
    %441 = vmatpush1.bf16.msra.mxu0 %v342
    %442 = vmatprep.subr.bf16.mxu0 0
    %443 = vmatpush1.bf16.msra.mxu0 %v343
    %444 = vmatprep.subr.bf16.mxu0 0
    %445 = vmatpush1.bf16.msra.mxu0 %v344
    %446 = vmatprep.subr.bf16.mxu0 0
    %447 = vmatpush1.bf16.msra.mxu0 %v345
    %448 = vmatprep.subr.bf16.mxu0 0
    %449 = vmatpush1.bf16.msra.mxu0 %v346
    %450 = vmatprep.subr.bf16.mxu0 0
    %451 = vmatpush1.bf16.msra.mxu0 %v347
    %452 = vmatprep.mubr.bf16.mxu0 %v183
    %453 = vmatmul.mubr.bf16.gmra.mrb[0].mxu0 %v182
    %v454 = vpop.f32.mrb[0].mxu0
    %v455 = vadd.f32 %v415, %v454
    %v456 = vpop.f32.mrb[0].mxu0
    %v457 = vpop.f32.mrb[0].mxu0
    %v458 = vpop.f32.mrb[0].mxu0
    %459 = vdwg.mxu0
    %460 = vst [vmem:[#allocation2] sm:$0xff] %v455
    %v461 = vld [vmem:[#allocation13] sm:$0xff]
    %v462 = vld [vmem:[#allocation2] sm:$0xff]
    %v463 = vld [vmem:[#allocation9] sm:$0xff]
    %v464 = vld [vmem:[#allocation9 + $0x8] sm:$0xff]
    %v465 = vld [vmem:[#allocation9 + $0x10] sm:$0xff]
    %v466 = vld [vmem:[#allocation9 + $0x18] sm:$0xff]
    %v467 = vld [vmem:[#allocation9 + $0x20] sm:$0xff]
    %v468 = vld [vmem:[#allocation9 + $0x28] sm:$0xff]
    %v469 = vld [vmem:[#allocation9 + $0x30] sm:$0xff]
    %v470 = vld [vmem:[#allocation9 + $0x38] sm:$0xff]
    %v471 = vld [vmem:[#allocation9 + $0x40] sm:$0xff]
    %v472 = vld [vmem:[#allocation9 + $0x48] sm:$0xff]
    %v473 = vld [vmem:[#allocation9 + $0x50] sm:$0xff]
    %v474 = vld [vmem:[#allocation9 + $0x58] sm:$0xff]
    %v475 = vld [vmem:[#allocation9 + $0x60] sm:$0xff]
    %v476 = vld [vmem:[#allocation9 + $0x68] sm:$0xff]
    %v477 = vld [vmem:[#allocation9 + $0x70] sm:$0xff]
    %v478 = vld [vmem:[#allocation9 + $0x78] sm:$0xff]
    %479 = vmatprep.subr.mxu0 0.0
    %480 = vmatpush1.msra.mxu0 %v463
    %481 = vmatprep.subr.mxu0 0.0
    %482 = vmatpush1.msra.mxu0 %v464
    %483 = vmatprep.subr.mxu0 0.0
    %484 = vmatpush1.msra.mxu0 %v465
    %485 = vmatprep.subr.mxu0 0.0
    %486 = vmatpush1.msra.mxu0 %v466
    %487 = vmatprep.subr.mxu0 0.0
    %488 = vmatpush1.msra.mxu0 %v467
    %489 = vmatprep.subr.mxu0 0.0
    %490 = vmatpush1.msra.mxu0 %v468
    %491 = vmatprep.subr.mxu0 0.0
    %492 = vmatpush1.msra.mxu0 %v469
    %493 = vmatprep.subr.mxu0 0.0
    %494 = vmatpush1.msra.mxu0 %v470
    %495 = vmatprep.subr.mxu0 0.0
    %496 = vmatpush1.msra.mxu0 %v471
    %497 = vmatprep.subr.mxu0 0.0
    %498 = vmatpush1.msra.mxu0 %v472
    %499 = vmatprep.subr.mxu0 0.0
    %500 = vmatpush1.msra.mxu0 %v473
    %501 = vmatprep.subr.mxu0 0.0
    %502 = vmatpush1.msra.mxu0 %v474
    %503 = vmatprep.subr.mxu0 0.0
    %504 = vmatpush1.msra.mxu0 %v475
    %505 = vmatprep.subr.mxu0 0.0
    %506 = vmatpush1.msra.mxu0 %v476
    %507 = vmatprep.subr.mxu0 0.0
    %508 = vmatpush1.msra.mxu0 %v477
    %509 = vmatprep.subr.mxu0 0.0
    %510 = vmatpush1.msra.mxu0 %v478
    %511 = vmatprep.subr.mxu0 0.0
    %512 = vmatpush1.msra.mxu0 0.0
    %513 = vmatprep.subr.mxu0 0.0
    %514 = vmatpush1.msra.mxu0 0.0
    %515 = vmatprep.subr.mxu0 0.0
    %516 = vmatpush1.msra.mxu0 0.0
    %517 = vmatprep.subr.mxu0 0.0
    %518 = vmatpush1.msra.mxu0 0.0
    %519 = vmatprep.subr.mxu0 0.0
    %520 = vmatpush1.msra.mxu0 0.0
    %521 = vmatprep.subr.mxu0 0.0
    %522 = vmatpush1.msra.mxu0 0.0
    %523 = vmatprep.subr.mxu0 0.0
    %524 = vmatpush1.msra.mxu0 0.0
    %525 = vmatprep.subr.mxu0 0.0
    %526 = vmatpush1.msra.mxu0 0.0
    %527 = vmatprep.subr.mxu0 0.0
    %528 = vmatpush1.msra.mxu0 0.0
    %529 = vmatprep.subr.mxu0 0.0
    %530 = vmatpush1.msra.mxu0 0.0
    %531 = vmatprep.subr.mxu0 0.0
    %532 = vmatpush1.msra.mxu0 0.0
    %533 = vmatprep.subr.mxu0 0.0
    %534 = vmatpush1.msra.mxu0 0.0
    %535 = vmatprep.subr.mxu0 0.0
    %536 = vmatpush1.msra.mxu0 0.0
    %537 = vmatprep.subr.mxu0 0.0
    %538 = vmatpush1.msra.mxu0 0.0
    %539 = vmatprep.subr.mxu0 0.0
    %540 = vmatpush1.msra.mxu0 0.0
    %541 = vmatprep.subr.mxu0 0.0
    %542 = vmatpush1.msra.mxu0 0.0
    %543 = vmatprep.mubr.f32.mxu0 0.0
    %544 = vmatmul.mubr.f32.gmra.mrb[0].mxu0 %v461
    %v545 = vpop.f32.mrb[0].mxu0
    %v546 = vadd.f32 0.0, %v545
    %v547 = vpop.f32.mrb[0].mxu0
    %548 = vdwg.mxu0
    %v549 = vadd.f32 %v462, %v546
    %v550 = vmax.f32 %v549, 0.0
    %551 = vst [vmem:[#allocation2] sm:$0xff] %v550
    %552 = vst [vmem:[#allocation13] sm:$0xff] %v550
    %v553 = vld [vmem:[#allocation2] sm:$0xff]
    %v554 = vld [vmem:[#allocation11] sm:$0xff]
    %v555 = vld [vmem:[#allocation11 + $0x8] sm:$0xff]
    %v556 = vld [vmem:[#allocation11 + $0x10] sm:$0xff]
    %v557 = vld [vmem:[#allocation11 + $0x18] sm:$0xff]
    %v558 = vld [vmem:[#allocation11 + $0x20] sm:$0xff]
    %v559 = vld [vmem:[#allocation11 + $0x28] sm:$0xff]
    %v560 = vld [vmem:[#allocation11 + $0x30] sm:$0xff]
    %v561 = vld [vmem:[#allocation11 + $0x38] sm:$0xff]
    %v562 = vld [vmem:[#allocation11 + $0x40] sm:$0xff]
    %v563 = vld [vmem:[#allocation11 + $0x48] sm:$0xff]
    %v564 = vld [vmem:[#allocation11 + $0x50] sm:$0xff]
    %v565 = vld [vmem:[#allocation11 + $0x58] sm:$0xff]
    %v566 = vld [vmem:[#allocation11 + $0x60] sm:$0xff]
    %v567 = vld [vmem:[#allocation11 + $0x68] sm:$0xff]
    %v568 = vld [vmem:[#allocation11 + $0x70] sm:$0xff]
    %v569 = vld [vmem:[#allocation11 + $0x78] sm:$0xff]
    %v570 = vld [vmem:[%s6] sm:$0x1]
    %v572 = vlaneseq
    %v573 = vshrl.u32 %v572, 7
    %v574 = vsub.s32 0, %v573
    %v575 = vrot.slane %v570, %v574
    %577 = vmatprep.subr.mxu0 0.0
    %578 = vmatpush1.msra.mxu0 %v554
    %579 = vmatprep.subr.mxu0 0.0
    %580 = vmatpush1.msra.mxu0 %v555
    %581 = vmatprep.subr.mxu0 0.0
    %582 = vmatpush1.msra.mxu0 %v556
    %583 = vmatprep.subr.mxu0 0.0
    %584 = vmatpush1.msra.mxu0 %v557
    %585 = vmatprep.subr.mxu0 0.0
    %586 = vmatpush1.msra.mxu0 %v558
    %587 = vmatprep.subr.mxu0 0.0
    %588 = vmatpush1.msra.mxu0 %v559
    %589 = vmatprep.subr.mxu0 0.0
    %590 = vmatpush1.msra.mxu0 %v560
    %591 = vmatprep.subr.mxu0 0.0
    %592 = vmatpush1.msra.mxu0 %v561
    %593 = vmatprep.subr.mxu0 0.0
    %594 = vmatpush1.msra.mxu0 %v562
    %595 = vmatprep.subr.mxu0 0.0
    %596 = vmatpush1.msra.mxu0 %v563
    %597 = vmatprep.subr.mxu0 0.0
    %598 = vmatpush1.msra.mxu0 %v564
    %599 = vmatprep.subr.mxu0 0.0
    %600 = vmatpush1.msra.mxu0 %v565
    %601 = vmatprep.subr.mxu0 0.0
    %602 = vmatpush1.msra.mxu0 %v566
    %603 = vmatprep.subr.mxu0 0.0
    %604 = vmatpush1.msra.mxu0 %v567
    %605 = vmatprep.subr.mxu0 0.0
    %606 = vmatpush1.msra.mxu0 %v568
    %607 = vmatprep.subr.mxu0 0.0
    %608 = vmatpush1.msra.mxu0 %v569
    %609 = vmatprep.subr.mxu0 0.0
    %610 = vmatpush1.msra.mxu0 0.0
    %611 = vmatprep.subr.mxu0 0.0
    %612 = vmatpush1.msra.mxu0 0.0
    %613 = vmatprep.subr.mxu0 0.0
    %614 = vmatpush1.msra.mxu0 0.0
    %615 = vmatprep.subr.mxu0 0.0
    %616 = vmatpush1.msra.mxu0 0.0
    %617 = vmatprep.subr.mxu0 0.0
    %618 = vmatpush1.msra.mxu0 0.0
    %619 = vmatprep.subr.mxu0 0.0
    %620 = vmatpush1.msra.mxu0 0.0
    %621 = vmatprep.subr.mxu0 0.0
    %622 = vmatpush1.msra.mxu0 0.0
    %623 = vmatprep.subr.mxu0 0.0
    %624 = vmatpush1.msra.mxu0 0.0
    %625 = vmatprep.subr.mxu0 0.0
    %626 = vmatpush1.msra.mxu0 0.0
    %627 = vmatprep.subr.mxu0 0.0
    %628 = vmatpush1.msra.mxu0 0.0
    %629 = vmatprep.subr.mxu0 0.0
    %630 = vmatpush1.msra.mxu0 0.0
    %631 = vmatprep.subr.mxu0 0.0
    %632 = vmatpush1.msra.mxu0 0.0
    %633 = vmatprep.subr.mxu0 0.0
    %634 = vmatpush1.msra.mxu0 0.0
    %635 = vmatprep.subr.mxu0 0.0
    %636 = vmatpush1.msra.mxu0 0.0
    %637 = vmatprep.subr.mxu0 0.0
    %638 = vmatpush1.msra.mxu0 0.0
    %639 = vmatprep.subr.mxu0 0.0
    %640 = vmatpush1.msra.mxu0 0.0
    %641 = vmatprep.mubr.f32.mxu0 0.0
    %642 = vmatmul.mubr.f32.gmra.mrb[0].mxu0 %v553
    %v643 = vpop.f32.mrb[0].mxu0
    %v644 = vadd.f32 %v575, %v643
    %v645 = vpop.f32.mrb[0].mxu0
    %646 = vdwg.mxu0
    %647 = vst [vmem:[#allocation12] sm:$0xff] %v644
    // Predicated region
    $region54: #{tpu_custom_call.1} parent=1 // pred_check
      _
    $region55: #{tpu_custom_call.1} parent=1 // pred_check_branch
      %649 = sbr.rel (0) target = $region57
    $region56: #{tpu_custom_call.1} parent=1 // pred_region
      %s651 = ssub.s32 128, 128
      %652 = vsyncadd [#allocation5], %s651
      %s654 = sshll.u32 [#allocation12], 4
      %s655 = int_to_ptr.vmem [resolvable:$true] %s654
      %657 = dma.vmem_to_hbm [thread:$0]  %s655, 128, %s7, [#allocation5]
    $region57: #{tpu_custom_call.1} parent=1 // pred_fallthru
      _
    // Predicated region
    $region58: #{tpu_custom_call.1} parent=1 // pred_check
      _
    $region59: #{tpu_custom_call.1} parent=1 // pred_check_branch
      %659 = sbr.rel (0) target = $region61
    $region60: #{tpu_custom_call.1} parent=1 // pred_region
      %s661 = ssub.s32 128, 128
      %662 = vsyncadd [#allocation14], %s661
      %s664 = sshll.u32 [#allocation13], 4
      %s665 = int_to_ptr.vmem [resolvable:$true] %s664
      %667 = dma.vmem_to_hbm [thread:$0]  %s665, 128, %s8, [#allocation14]
    $region61: #{tpu_custom_call.1} parent=1 // pred_fallthru
      _
    // Predicated region
    $region62: #{tpu_custom_call.1} parent=1 // pred_check
      _
    $region63: #{tpu_custom_call.1} parent=1 // pred_check_branch
      %669 = sbr.rel (0) target = $region65
    $region64: #{tpu_custom_call.1} parent=1 // pred_region
      %670 = dma.done [#allocation5], 128
    $region65: #{tpu_custom_call.1} parent=1 // pred_fallthru
      _
    // Predicated region
    $region66: #{tpu_custom_call.1} parent=1 // pred_check
      _
    $region67: #{tpu_custom_call.1} parent=1 // pred_check_branch
      %672 = sbr.rel (0) target = $region69
    $region68: #{tpu_custom_call.1} parent=1 // pred_region
      %673 = dma.done [#allocation14], 128
    $region69: #{tpu_custom_call.1} parent=1 // pred_fallthru
      _
    %674 = vsyncpa [#allocation4], 1
    %675 = vsyncpa [#allocation7], 1
    %676 = vsyncpa [#allocation10], 1
    %677 = vsyncpa [#allocation5], 1
    %678 = vsyncpa [#allocation14], 1

</llo_original>
